<compile_context>
chip_gen: v7x
topology: tpu7x:2x2x1
jax: 0.10.0
libtpu: 0.0.40
codegen_flags: <defaults>
</compile_context>

<pallas_src>
import jax
import jax.numpy as jnp
from jax.experimental import pallas as pl
from jax.experimental.pallas import tpu as pltpu

LANES = 128
# 2048 x 128 f32 = 1 MiB per input per pipeline buffer
# -> 2 inputs x 2 buffers = 4 MiB, comfortably under v5e's 16 MiB scoped-VMEM
#    default and v7x's 32 MiB (64 MiB physical).
MAX_ROW_TILE = 2048


def _cdiv(a, b):
    return -(-a // b)


def _round_up(a, m):
    return _cdiv(a, m) * m


def _make_loss_sums_kernel(n_elem: int, row_tile: int, need_mask: bool):
    """Build the reduction kernel with static constants baked in."""

    def kernel(pred_ref, true_ref, out_ref):
        # out_ref: (4, 8, 128) f32 block, resident across the inner
        # ("arbitrary") grid axis -> accumulator for this core's tiles.
        #   [0] sum of element-wise BCE-with-logits terms
        #   [1] sum of sigmoid(pred) * true   (dice intersection)
        #   [2] sum of sigmoid(pred)
        #   [3] sum of true
        c = pl.program_id(0)          # core split ("parallel")
        j = pl.program_id(1)          # tile index within this core ("arbitrary")

        @pl.when(j == 0)
        def _():
            out_ref[...] = jnp.zeros_like(out_ref)

        x = pred_ref[...].astype(jnp.float32)
        t = true_ref[...].astype(jnp.float32)

        # Shared transcendental: e = exp(-|x|) feeds both BCE and sigmoid.
        # Numerically-stable BCE with logits: max(x,0) - x*t + log1p(exp(-|x|))
        e = jnp.exp(-jnp.abs(x))
        bce = jnp.maximum(x, 0.0) - x * t + jnp.log1p(e)
        p = jnp.where(x >= 0.0, 1.0, e) / (1.0 + e)   # == sigmoid(x), stable

        if need_mask:
            # Mask lane padding / partial last tile / duplicated clamp tiles
            # instead of padding the inputs in HBM (no extra HBM pass).
            tile_idx = c * pl.num_programs(1) + j
            base = tile_idx * (row_tile * LANES)
            rows = jax.lax.broadcasted_iota(jnp.int32, (row_tile, LANES), 0)
            cols = jax.lax.broadcasted_iota(jnp.int32, (row_tile, LANES), 1)
            mask = (base + rows * LANES + cols) < n_elem
            zero = jnp.float32(0.0)
            bce = jnp.where(mask, bce, zero)
            p = jnp.where(mask, p, zero)
            t = jnp.where(mask, t, zero)

        def vsum(v):
            # (row_tile, 128) -> (row_tile//8, 8, 128); summing over axis 0 is
            # pure vreg-wise VPU adds (no cross-lane XLU work in the hot loop).
            return jnp.sum(v.reshape(row_tile // 8, 8, LANES), axis=0)

        out_ref[0] += vsum(bce)
        out_ref[1] += vsum(p * t)
        out_ref[2] += vsum(p)
        out_ref[3] += vsum(t)

    return kernel


def _loss_sums(y_pred: jax.Array, y_true: jax.Array) -> jax.Array:
    """Return the 4 sufficient statistics [sum bce, sum p*t, sum p, sum t]."""
    n_elem = y_pred.size
    pred = y_pred.reshape(-1)
    true = y_true.reshape(-1)

    # Only pad to a lane boundary (<= 127 elements); the ragged tail is masked
    # inside the kernel, so no full-array pad/copy pass over HBM is needed.
    lane_pad = (-n_elem) % LANES
    if lane_pad:
        pred = jnp.pad(pred, (0, lane_pad))
        true = jnp.pad(true, (0, lane_pad))
    rows = (n_elem + lane_pad) // LANES
    pred2 = pred.reshape(rows, LANES)
    true2 = true.reshape(rows, LANES)

    row_tile = min(MAX_ROW_TILE, _round_up(rows, 8))
    n_tiles = _cdiv(rows, row_tile)
    n_cores = 2 if n_tiles >= 2 else 1      # megacore split (v7x); harmless on 1-TC chips
    tiles_per_core = _cdiv(n_tiles, n_cores)
    # Mask only needed if the grid does not cover exactly n_elem valid elements.
    need_mask = n_elem != n_cores * tiles_per_core * row_tile * LANES

    def in_map(c, j):
        # Clamp so the (rare) spill tile of the second core re-reads the last
        # valid tile; its contribution is masked to zero inside the kernel.
        return (jnp.minimum(c * tiles_per_core + j, n_tiles - 1), 0)

    out = pl.pallas_call(
        _make_loss_sums_kernel(n_elem, row_tile, need_mask),
        out_shape=jax.ShapeDtypeStruct((n_cores, 4, 8, LANES), jnp.float32),
        grid_spec=pltpu.PrefetchScalarGridSpec(
            num_scalar_prefetch=0,
            grid=(n_cores, tiles_per_core),
            in_specs=[
                pl.BlockSpec((row_tile, LANES), in_map),
                pl.BlockSpec((row_tile, LANES), in_map),
            ],
            out_specs=pl.BlockSpec((None, 4, 8, LANES),
                                   lambda c, j: (c, 0, 0, 0)),
        ),
        compiler_params=pltpu.CompilerParams(
            dimension_semantics=("parallel", "arbitrary"),
        ),
    )(pred2, true2)

    # Tiny epilogue reduction (n_cores*4*8*128 floats) done by XLA.
    return jnp.sum(out, axis=(0, 2, 3))


class Losses:
    """JAX/Pallas port of the PyTorch `Losses` module instantiated with
    [BCEWithLogitsLoss (mean), soft DiceLoss] criterions."""

    def __init__(self, weights=(0.5, 1.0), dice_eps: float = 1e-6):
        self.weights = list(weights)
        self.dice_eps = dice_eps
        # criterion names matching criterion.__class__.__name__.lower()
        self.names = ["bcewithlogitsloss", "diceloss"]
        assert len(self.weights) == len(self.names)

    def __call__(self, y_pred: jax.Array, y_true: jax.Array):
        n_elem = y_pred.size
        sums = _loss_sums(y_pred, y_true)
        bce = sums[0] / jnp.float32(n_elem)          # mean reduction
        dice = 1.0 - (2.0 * sums[1] + self.dice_eps) / (
            sums[2] + sums[3] + self.dice_eps)
        losses = [bce, dice]
        return {
            name: jnp.float32(w) * loss
            for name, w, loss in zip(self.names, self.weights, losses)
        }


def _reference(y_pred, y_true, weights=(0.5, 1.0), dice_eps=1e-6):
    x = y_pred.astype(jnp.float32)
    t = y_true.astype(jnp.float32)
    bce = jnp.mean(jnp.maximum(x, 0.0) - x * t + jnp.log1p(jnp.exp(-jnp.abs(x))))
    p = jax.nn.sigmoid(x)
    dice = 1.0 - (2.0 * jnp.sum(p * t) + dice_eps) / (jnp.sum(p) + jnp.sum(t) + dice_eps)
    return {"bcewithlogitsloss": weights[0] * bce, "diceloss": weights[1] * dice}


if __name__ == "__main__":
    losses = Losses(weights=[0.5, 1.0])

    def check(shape, key):
        k1, k2 = jax.random.split(key)
        y_pred = jax.random.normal(k1, shape, dtype=jnp.float32)
        y_true = (jax.random.uniform(k2, shape) > 0.5).astype(jnp.float32)
        out = losses(y_pred, y_true)
        out = jax.tree_util.tree_map(jax.block_until_ready, out)
        ref = _reference(y_pred, y_true)
        for name in out:
            assert jnp.allclose(out[name], ref[name], rtol=1e-4, atol=1e-6), (
                shape, name, out[name], ref[name])

    key = jax.random.PRNGKey(0)
    k1, k2, k3 = jax.random.split(key, 3)
    # Primary case: NCHW logits/targets as in the PyTorch module.
    check((2, 4, 16, 16), k1)
    # Non-lane-aligned element count -> exercises the in-kernel tail mask.
    check((2, 3, 17, 19), k2)
    # Multi-tile + 2-way core split (+ partial last tile) path.
    check((2, 4, 181, 182), k3)

    print("KERNEL_OK")
</pallas_src>

<mosaic_0001>
module attributes {stable_mosaic.version = 11 : i64} {
  func.func @kernel(%arg0: i32, %arg1: i32, %arg2: memref<16x128xf32, #tpu.memory_space<vmem>>, %arg3: memref<16x128xf32, #tpu.memory_space<vmem>>, %arg4: memref<1x4x8x128xf32, #tpu.memory_space<vmem>>) attributes {dimension_semantics = [#tpu.dimension_semantics<parallel>, #tpu.dimension_semantics<arbitrary>], iteration_bounds = array<i64: 1, 1>, scalar_prefetch = 0 : i64, scratch_operands = 0 : i64, tpu.core_type = #tpu.core_type<tc>, window_params = [{transform_indices = @transform_0, window_bounds = array<i64: 16, 128>}, {transform_indices = @transform_1, window_bounds = array<i64: 16, 128>}, {transform_indices = @transform_2, window_bounds = array<i64: 1, 4, 8, 128>}]} {
    %c0_i32 = arith.constant 0 : i32
    %0 = arith.cmpi eq, %arg1, %c0_i32 : i32
    %1 = arith.extui %0 : i1 to i32
    %c0_i32_0 = arith.constant 0 : i32
    %2 = arith.cmpi ne, %1, %c0_i32_0 : i32
    scf.if %2 {
      %cst_41 = arith.constant 0.000000e+00 : f32
      %55 = vector.broadcast %cst_41 : f32 to vector<4x8x128xf32>
      %c0_42 = arith.constant 0 : index
      %c0_43 = arith.constant 0 : index
      %c0_44 = arith.constant 0 : index
      %c0_45 = arith.constant 0 : index
      %56 = vector.load %arg4[%c0_42, %c0_43, %c0_44, %c0_45] : memref<1x4x8x128xf32, #tpu.memory_space<vmem>>, vector<1x4x8x128xf32>
      %57 = vector.shape_cast %56 : vector<1x4x8x128xf32> to vector<4x8x128xf32>
      %58 = vector.shape_cast %55 : vector<4x8x128xf32> to vector<1x4x8x128xf32>
      tpu.vector_store %arg4[%c0_42, %c0_43, %c0_44, %c0_45], %58 {strides = array<i32>} : memref<1x4x8x128xf32, #tpu.memory_space<vmem>>, vector<1x4x8x128xf32>,
    } else {
    }
    %c0 = arith.constant 0 : index
    %c0_1 = arith.constant 0 : index
    %3 = vector.load %arg2[%c0, %c0_1] : memref<16x128xf32, #tpu.memory_space<vmem>>, vector<16x128xf32>
    %c0_2 = arith.constant 0 : index
    %c0_3 = arith.constant 0 : index
    %4 = vector.load %arg3[%c0_2, %c0_3] : memref<16x128xf32, #tpu.memory_space<vmem>>, vector<16x128xf32>
    %5 = math.absf %3 : vector<16x128xf32>
    %cst = arith.constant 0.000000e+00 : f32
    %6 = vector.broadcast %cst : f32 to vector<16x128xf32>
    %7 = arith.subf %6, %5 : vector<16x128xf32>
    %8 = math.exp %7 : vector<16x128xf32>
    %cst_4 = arith.constant 0.000000e+00 : f32
    %9 = vector.broadcast %cst_4 : f32 to vector<16x128xf32>
    %10 = arith.maximumf %3, %9 : vector<16x128xf32>
    %11 = arith.mulf %3, %4 : vector<16x128xf32>
    %12 = arith.subf %10, %11 : vector<16x128xf32>
    %13 = math.log1p %8 : vector<16x128xf32>
    %14 = arith.addf %12, %13 : vector<16x128xf32>
    %cst_5 = arith.constant 0.000000e+00 : f32
    %15 = vector.broadcast %cst_5 : f32 to vector<16x128xf32>
    %16 = arith.cmpf oge, %3, %15 : vector<16x128xf32>
    %cst_6 = arith.constant 1.000000e+00 : f32
    %17 = vector.broadcast %cst_6 : f32 to vector<16x128xf32>
    %18 = arith.select %16, %17, %8 : vector<16x128xi1>, vector<16x128xf32>
    %cst_7 = arith.constant 1.000000e+00 : f32
    %19 = vector.broadcast %cst_7 : f32 to vector<16x128xf32>
    %20 = arith.addf %19, %8 : vector<16x128xf32>
    %21 = arith.divf %18, %20 : vector<16x128xf32>
    %c0_8 = arith.constant 0 : index
    %c0_9 = arith.constant 0 : index
    %c0_10 = arith.constant 0 : index
    %c0_11 = arith.constant 0 : index
    %22 = vector.load %arg4[%c0_8, %c0_9, %c0_10, %c0_11] : memref<1x4x8x128xf32, #tpu.memory_space<vmem>>, vector<1x1x8x128xf32>
    %23 = vector.shape_cast %22 : vector<1x1x8x128xf32> to vector<8x128xf32>
    %24 = vector.shape_cast %14 : vector<16x128xf32> to vector<2x8x128xf32>
    %cst_12 = arith.constant dense<0.000000e+00> : vector<8x128xf32>
    %25 = vector.multi_reduction <add>, %24, %cst_12 [0] : vector<2x8x128xf32> to vector<8x128xf32>
    %26 = arith.addf %23, %25 : vector<8x128xf32>
    %c0_13 = arith.constant 0 : index
    %c0_14 = arith.constant 0 : index
    %c0_15 = arith.constant 0 : index
    %c0_16 = arith.constant 0 : index
    %27 = vector.load %arg4[%c0_13, %c0_14, %c0_15, %c0_16] : memref<1x4x8x128xf32, #tpu.memory_space<vmem>>, vector<1x1x8x128xf32>
    %28 = vector.shape_cast %27 : vector<1x1x8x128xf32> to vector<8x128xf32>
    %29 = vector.shape_cast %26 : vector<8x128xf32> to vector<1x1x8x128xf32>
    tpu.vector_store %arg4[%c0_13, %c0_14, %c0_15, %c0_16], %29 {strides = array<i32>} : memref<1x4x8x128xf32, #tpu.memory_space<vmem>>, vector<1x1x8x128xf32>,
    %c0_17 = arith.constant 0 : index
    %c1 = arith.constant 1 : index
    %c0_18 = arith.constant 0 : index
    %c0_19 = arith.constant 0 : index
    %30 = vector.load %arg4[%c0_17, %c1, %c0_18, %c0_19] : memref<1x4x8x128xf32, #tpu.memory_space<vmem>>, vector<1x1x8x128xf32>
    %31 = vector.shape_cast %30 : vector<1x1x8x128xf32> to vector<8x128xf32>
    %32 = arith.mulf %21, %4 : vector<16x128xf32>
    %33 = vector.shape_cast %32 : vector<16x128xf32> to vector<2x8x128xf32>
    %cst_20 = arith.constant dense<0.000000e+00> : vector<8x128xf32>
    %34 = vector.multi_reduction <add>, %33, %cst_20 [0] : vector<2x8x128xf32> to vector<8x128xf32>
    %35 = arith.addf %31, %34 : vector<8x128xf32>
    %c0_21 = arith.constant 0 : index
    %c1_22 = arith.constant 1 : index
    %c0_23 = arith.constant 0 : index
    %c0_24 = arith.constant 0 : index
    %36 = vector.load %arg4[%c0_21, %c1_22, %c0_23, %c0_24] : memref<1x4x8x128xf32, #tpu.memory_space<vmem>>, vector<1x1x8x128xf32>
    %37 = vector.shape_cast %36 : vector<1x1x8x128xf32> to vector<8x128xf32>
    %38 = vector.shape_cast %35 : vector<8x128xf32> to vector<1x1x8x128xf32>
    tpu.vector_store %arg4[%c0_21, %c1_22, %c0_23, %c0_24], %38 {strides = array<i32>} : memref<1x4x8x128xf32, #tpu.memory_space<vmem>>, vector<1x1x8x128xf32>,
    %c0_25 = arith.constant 0 : index
    %c2 = arith.constant 2 : index
    %c0_26 = arith.constant 0 : index
    %c0_27 = arith.constant 0 : index
    %39 = vector.load %arg4[%c0_25, %c2, %c0_26, %c0_27] : memref<1x4x8x128xf32, #tpu.memory_space<vmem>>, vector<1x1x8x128xf32>
    %40 = vector.shape_cast %39 : vector<1x1x8x128xf32> to vector<8x128xf32>
    %41 = vector.shape_cast %21 : vector<16x128xf32> to vector<2x8x128xf32>
    %cst_28 = arith.constant dense<0.000000e+00> : vector<8x128xf32>
    %42 = vector.multi_reduction <add>, %41, %cst_28 [0] : vector<2x8x128xf32> to vector<8x128xf32>
    %43 = arith.addf %40, %42 : vector<8x128xf32>
    %c0_29 = arith.constant 0 : index
    %c2_30 = arith.constant 2 : index
    %c0_31 = arith.constant 0 : index
    %c0_32 = arith.constant 0 : index
    %44 = vector.load %arg4[%c0_29, %c2_30, %c0_31, %c0_32] : memref<1x4x8x128xf32, #tpu.memory_space<vmem>>, vector<1x1x8x128xf32>
    %45 = vector.shape_cast %44 : vector<1x1x8x128xf32> to vector<8x128xf32>
    %46 = vector.shape_cast %43 : vector<8x128xf32> to vector<1x1x8x128xf32>
    tpu.vector_store %arg4[%c0_29, %c2_30, %c0_31, %c0_32], %46 {strides = array<i32>} : memref<1x4x8x128xf32, #tpu.memory_space<vmem>>, vector<1x1x8x128xf32>,
    %c0_33 = arith.constant 0 : index
    %c3 = arith.constant 3 : index
    %c0_34 = arith.constant 0 : index
    %c0_35 = arith.constant 0 : index
    %47 = vector.load %arg4[%c0_33, %c3, %c0_34, %c0_35] : memref<1x4x8x128xf32, #tpu.memory_space<vmem>>, vector<1x1x8x128xf32>
    %48 = vector.shape_cast %47 : vector<1x1x8x128xf32> to vector<8x128xf32>
    %49 = vector.shape_cast %4 : vector<16x128xf32> to vector<2x8x128xf32>
    %cst_36 = arith.constant dense<0.000000e+00> : vector<8x128xf32>
    %50 = vector.multi_reduction <add>, %49, %cst_36 [0] : vector<2x8x128xf32> to vector<8x128xf32>
    %51 = arith.addf %48, %50 : vector<8x128xf32>
    %c0_37 = arith.constant 0 : index
    %c3_38 = arith.constant 3 : index
    %c0_39 = arith.constant 0 : index
    %c0_40 = arith.constant 0 : index
    %52 = vector.load %arg4[%c0_37, %c3_38, %c0_39, %c0_40] : memref<1x4x8x128xf32, #tpu.memory_space<vmem>>, vector<1x1x8x128xf32>
    %53 = vector.shape_cast %52 : vector<1x1x8x128xf32> to vector<8x128xf32>
    %54 = vector.shape_cast %51 : vector<8x128xf32> to vector<1x1x8x128xf32>
    tpu.vector_store %arg4[%c0_37, %c3_38, %c0_39, %c0_40], %54 {strides = array<i32>} : memref<1x4x8x128xf32, #tpu.memory_space<vmem>>, vector<1x1x8x128xf32>,
    return
  }
  func.func @transform_0(%arg0: i32, %arg1: i32) -> (i32, i32) {
    %c1_i32 = arith.constant 1 : i32
    %0 = arith.muli %arg0, %c1_i32 : i32
    %1 = arith.addi %0, %arg1 : i32
    %c0_i32 = arith.constant 0 : i32
    %2 = arith.minsi %1, %c0_i32 : i32
    %c0_i32_0 = arith.constant 0 : i32
    %c0_i32_1 = arith.constant 0 : i32
    return %2, %c0_i32_0 : i32, i32
  }
  func.func @transform_1(%arg0: i32, %arg1: i32) -> (i32, i32) {
    %c1_i32 = arith.constant 1 : i32
    %0 = arith.muli %arg0, %c1_i32 : i32
    %1 = arith.addi %0, %arg1 : i32
    %c0_i32 = arith.constant 0 : i32
    %2 = arith.minsi %1, %c0_i32 : i32
    %c0_i32_0 = arith.constant 0 : i32
    %c0_i32_1 = arith.constant 0 : i32
    return %2, %c0_i32_0 : i32, i32
  }
  func.func @transform_2(%arg0: i32, %arg1: i32) -> (i32, i32, i32, i32) {
    %c0_i32 = arith.constant 0 : i32
    %c0_i32_0 = arith.constant 0 : i32
    %c0_i32_1 = arith.constant 0 : i32
    %c0_i32_2 = arith.constant 0 : i32
    return %arg0, %c0_i32, %c0_i32_0, %c0_i32_1 : i32, i32, i32, i32
  }
}

</mosaic_0001>

<llo_original>
// kernel: tpu_custom_call.1
$region0: #{tpu_custom_call.1}
  #allocation0 [shape = 'u32[]', space=smem, size = 0x4, offset = 0x4, fixed_abs, tag = 'smem constant byte address 0x4 - core index']
  #allocation1 [shape = 'u32[144,128]{1,0:T(1,128)}', space=vmem, size = 0x12000, scoped, tag = 'internal scratch']
  %s0 = inlined_call_operand.hbm [shape: f32[16,128], index: 0, kind: input, shape index: {}]
  %s1 = inlined_call_operand.hbm [shape: f32[16,128], index: 1, kind: input, shape index: {}]
  %s2 = inlined_call_operand.hbm [shape: f32[1,4,8,128], index: 2, kind: output, shape index: {}]
  %s3 = sld [smem:[#allocation0]]
  $region30: #{tpu_custom_call.1} parent=0
    _
  %s5 = ssub.s32 1, %s3
  %s6 = scalar_select 0, %s5, %s3
  $region1: #{tpu_custom_call.1} parent=0
    #allocation2 [shape = 'u8[8192]{0}', space=vmem, size = 0x2000, scoped, tag = 'input window, operand 0, single buffered']
    #allocation3 [shape = 's32[1]{0}', space=sflag, size = 0x4, scoped, tag = 'scoped memory for tpu_custom_call.1']
    #allocation4 [shape = 's32[1]{0}', space=sflag, size = 0x4, scoped, tag = 'scoped memory for tpu_custom_call.1']
    #allocation5 [shape = 'u8[8192]{0}', space=vmem, size = 0x2000, scoped, tag = 'input window, operand 1, single buffered']
    #allocation6 [shape = 's32[1]{0}', space=sflag, size = 0x4, scoped, tag = 'scoped memory for tpu_custom_call.1']
    #allocation7 [shape = 'u8[16384]{0}', space=vmem, size = 0x4000, scoped, tag = 'output window, operand 0, single buffered']
    %7 = vsyncpa [#allocation3], 0
    %8 = vsyncpa [#allocation6], 0
    %9 = vsyncpa [#allocation4], 0
    // Predicated region
    $region2: #{tpu_custom_call.1} parent=1 // pred_check
      _
    $region3: #{tpu_custom_call.1} parent=1 // pred_check_branch
      %11 = sbr.rel (0) target = $region5
    $region4: #{tpu_custom_call.1} parent=1 // pred_region
      %s12 = sadd.s32 0, 0
      %p13 = scmp.lt.s32.totalorder %s12, 0
      %s14 = scalar_select %p13, %s12, 0
      %s15 = smul.u32 2, %s14
      %s17 = ssub.s32 256, 256
      %18 = vsyncadd [#allocation3], %s17
      %s19 = smul.addr %s15, 128
      %s20 = scalar_lea.hbm %s0, %s19
      %s21 = sshll.u32 [#allocation2], 4
      %s22 = int_to_ptr.vmem [resolvable:$true] %s21
      %27 = dma.hbm_to_vmem [thread:$0]  %s20, 256, %s22, [#allocation3], 128, 128, 8
    $region5: #{tpu_custom_call.1} parent=1 // pred_fallthru
      _
    // Predicated region
    $region6: #{tpu_custom_call.1} parent=1 // pred_check
      _
    $region7: #{tpu_custom_call.1} parent=1 // pred_check_branch
      %29 = sbr.rel (0) target = $region9
    $region8: #{tpu_custom_call.1} parent=1 // pred_region
      %s30 = sadd.s32 0, 0
      %p31 = scmp.lt.s32.totalorder %s30, 0
      %s32 = scalar_select %p31, %s30, 0
      %s33 = smul.u32 2, %s32
      %s35 = ssub.s32 256, 256
      %36 = vsyncadd [#allocation6], %s35
      %s37 = smul.addr %s33, 128
      %s38 = scalar_lea.hbm %s1, %s37
      %s39 = sshll.u32 [#allocation5], 4
      %s40 = int_to_ptr.vmem [resolvable:$true] %s39
      %45 = dma.hbm_to_vmem [thread:$0]  %s38, 256, %s40, [#allocation6], 128, 128, 8
    $region9: #{tpu_custom_call.1} parent=1 // pred_fallthru
      _
    // Predicated region
    $region10: #{tpu_custom_call.1} parent=1 // pred_check
      _
    $region11: #{tpu_custom_call.1} parent=1 // pred_check_branch
      %47 = sbr.rel (0) target = $region13
    $region12: #{tpu_custom_call.1} parent=1 // pred_region
      %48 = dma.done [#allocation3], 256
    $region13: #{tpu_custom_call.1} parent=1 // pred_fallthru
      _
    // Predicated region
    $region14: #{tpu_custom_call.1} parent=1 // pred_check
      _
    $region15: #{tpu_custom_call.1} parent=1 // pred_check_branch
      %50 = sbr.rel (0) target = $region17
    $region16: #{tpu_custom_call.1} parent=1 // pred_region
      %51 = dma.done [#allocation6], 256
    $region17: #{tpu_custom_call.1} parent=1 // pred_fallthru
      _
    %s52 = sadd.s32 0, 0
    %p53 = scmp.lt.s32.totalorder %s52, 0
    %s54 = scalar_select %p53, %s52, 0
    %s55 = smul.u32 2, %s54
    %s56 = sadd.s32 0, 0
    %p57 = scmp.lt.s32.totalorder %s56, 0
    %s58 = scalar_select %p57, %s56, 0
    %s59 = smul.u32 2, %s58
    %p60 = scmp.eq.s32.totalorder 0, 0
    // Predicated region
    $region18: #{tpu_custom_call.1} parent=1 // pred_check
      %p61 = pneg %p60
    $region19: #{tpu_custom_call.1} parent=1 // pred_check_branch
      %63 = sbr.rel (%p61) target = $region21
    $region20: #{tpu_custom_call.1} parent=1 // pred_region
      %64 = vst [vmem:[#allocation7] sm:$0xff] 0.0
      %65 = vst [vmem:[#allocation7 + $0x8] sm:$0xff] 0.0
      %66 = vst [vmem:[#allocation7 + $0x10] sm:$0xff] 0.0
      %67 = vst [vmem:[#allocation7 + $0x18] sm:$0xff] 0.0
    $region21: #{tpu_custom_call.1} parent=1 // pred_fallthru
      _
    %v68 = vld [vmem:[#allocation2] sm:$0xff]
    %v69 = vld [vmem:[#allocation2 + $0x8] sm:$0xff]
    %v70 = vld [vmem:[#allocation5] sm:$0xff]
    %v71 = vld [vmem:[#allocation5 + $0x8] sm:$0xff]
    %v72 = vand.u32 2147483647, %v68
    %v73 = vand.u32 2147483647, %v69
    %v74 = vsub.f32 0.0, %v72
    %v75 = vsub.f32 0.0, %v73
    %v76 = vmul.f32 %v74, 1.442695
    %v77 = vpow.pop %v76
    %v78 = vmul.f32 %v75, 1.442695
    %v79 = vpow.pop %v78
    %v80 = vmax.f32 %v68, 0.0
    %v81 = vmax.f32 %v69, 0.0
    %v82 = vmul.f32 %v68, %v70
    %v83 = vmul.f32 %v69, %v71
    %v84 = vsub.f32 %v80, %v82
    %v85 = vsub.f32 %v81, %v83
    %v86 = vadd.f32 %v77, 1.0
    %v87 = vlog2.pop %v86
    %v88 = vmul.f32 %v87, 0.6931472
    %v89 = vmul.f32 -0.5, %v77
    %v90 = vadd.f32 %v89, 1.0
    %v91 = vmul.f32 %v90, %v77
    %v92 = vand.u32 2147483647, %v77
    %vm93 = vcmp.lt.f32.partialorder %v92, 0.0004427343
    %v94 = vsel %vm93, %v91, %v88
    %v95 = vadd.f32 %v79, 1.0
    %v96 = vlog2.pop %v95
    %v97 = vmul.f32 %v96, 0.6931472
    %v98 = vmul.f32 -0.5, %v79
    %v99 = vadd.f32 %v98, 1.0
    %v100 = vmul.f32 %v99, %v79
    %v101 = vand.u32 2147483647, %v79
    %vm102 = vcmp.lt.f32.partialorder %v101, 0.0004427343
    %v103 = vsel %vm102, %v100, %v97
    %v104 = vadd.f32 %v84, %v94
    %v105 = vadd.f32 %v85, %v103
    %vm106 = vcmp.ge.f32.partialorder %v68, 0.0
    %vm107 = vcmp.ge.f32.partialorder %v69, 0.0
    %v108 = vsel %vm106, 1.0, %v77
    %v109 = vsel %vm107, 1.0, %v79
    %v110 = vadd.f32 %v77, 1.0
    %v111 = vadd.f32 %v79, 1.0
    %v112 = vrcp.pop %v110
    %v113 = vmul.f32 %v108, %v112
    %v114 = vrcp.pop %v111
    %v115 = vmul.f32 %v109, %v114
    %v116 = vld [vmem:[#allocation7] sm:$0xff]
    %v117 = vadd.f32 %v104, %v105
    %v118 = vadd.f32 %v116, %v117
    %119 = vst [vmem:[#allocation7] sm:$0xff] %v118
    %s120 = scalar_lea.vmem [#allocation7], 8
    %v121 = vld [vmem:[%s120] sm:$0xff]
    %v122 = vmul.f32 %v113, %v70
    %v123 = vmul.f32 %v115, %v71
    %v124 = vadd.f32 %v122, %v123
    %v125 = vadd.f32 %v121, %v124
    %126 = vst [vmem:[%s120] sm:$0xff] %v125
    %s127 = scalar_lea.vmem [#allocation7], 16
    %v128 = vld [vmem:[%s127] sm:$0xff]
    %v129 = vadd.f32 %v113, %v115
    %v130 = vadd.f32 %v128, %v129
    %131 = vst [vmem:[%s127] sm:$0xff] %v130
    %s132 = scalar_lea.vmem [#allocation7], 24
    %v133 = vld [vmem:[%s132] sm:$0xff]
    %v134 = vadd.f32 %v70, %v71
    %v135 = vadd.f32 %v133, %v134
    %136 = vst [vmem:[%s132] sm:$0xff] %v135
    // Predicated region
    $region22: #{tpu_custom_call.1} parent=1 // pred_check
      _
    $region23: #{tpu_custom_call.1} parent=1 // pred_check_branch
      %138 = sbr.rel (0) target = $region25
    $region24: #{tpu_custom_call.1} parent=1 // pred_region
      %s140 = ssub.s32 512, 512
      %141 = vsyncadd [#allocation4], %s140
      %s142 = sshll.u32 [#allocation7], 4
      %s143 = int_to_ptr.vmem [resolvable:$true] %s142
      %148 = dma.vmem_to_hbm [thread:$0]  %s143, 512, %s2, [#allocation4], 128, 128, 8
    $region25: #{tpu_custom_call.1} parent=1 // pred_fallthru
      _
    // Predicated region
    $region26: #{tpu_custom_call.1} parent=1 // pred_check
      _
    $region27: #{tpu_custom_call.1} parent=1 // pred_check_branch
      %150 = sbr.rel (0) target = $region29
    $region28: #{tpu_custom_call.1} parent=1 // pred_region
      %151 = dma.done [#allocation4], 512
    $region29: #{tpu_custom_call.1} parent=1 // pred_fallthru
      _
    %152 = vsyncpa [#allocation3], 1
    %153 = vsyncpa [#allocation6], 1
    %154 = vsyncpa [#allocation4], 1

</llo_original>
